<compile_context>
chip_gen: v7x
topology: tpu7x:2x2x1
jax: 0.10.0
libtpu: 0.0.40
codegen_flags: <defaults>
</compile_context>

<pallas_src>
import functools

import jax
import jax.numpy as jnp
from jax.experimental import pallas as pl
from jax.experimental.pallas import tpu as pltpu

EPS = 1e-5


def bottleneck1d_kernel(x_ref, w1_ref, b1_ref, w2_ref, b2_ref, w3_ref, b3_ref,
                        mp_ref, mn_ref, out_ref, *, batch_per_tile):
    # Small constants / weights, loaded once per grid step.
    w1 = w1_ref[...]                      # [C_mid, C_in]      (compute dtype, bf16)
    w2 = w2_ref[...]                      # [C_mid, 3*C_mid]   (compute dtype)
    w3 = w3_ref[...]                      # [C_out, C_mid]     (compute dtype)
    b1 = b1_ref[...]                      # [C_mid, 1] f32 (BN folded)
    b2 = b2_ref[...]                      # [C_mid, 1] f32
    b3 = b3_ref[...]                      # [C_out, 1] f32
    mp = mp_ref[...]                      # [1, L] f32, zero at column 0      (left  pad)
    mn = mn_ref[...]                      # [1, L] f32, zero at column L - 1  (right pad)

    for j in range(batch_per_tile):       # static unroll over whole sequences in this tile
        x = x_ref[j]                      # [C_in, L] f32 (kept f32 for the residual)
        xm = x.astype(w1.dtype)

        # conv1 (k=1, BN1 folded) + ReLU.  Lanes = L, contraction = C_in.
        h1 = jnp.dot(w1, xm, preferred_element_type=jnp.float32) + b1
        h1 = jnp.maximum(h1, 0.0)         # [C_mid, L] f32

        # conv2 (k=3, pad=1, stride=1, BN2 folded) + ReLU.
        # Shifted taps via lane roll (wrap column is zeroed by the precomputed mask, which is
        # exactly the conv zero-padding because every tile holds whole sequences), fused into
        # one K = 3*C_mid matmul.
        L = h1.shape[-1]
        prev = pltpu.roll(h1, shift=1, axis=1) * mp        # h1 at position l-1
        nxt = pltpu.roll(h1, shift=L - 1, axis=1) * mn     # h1 at position l+1
        stack = jnp.concatenate([prev, h1, nxt], axis=0).astype(w2.dtype)   # [3*C_mid, L]
        h2 = jnp.dot(w2, stack, preferred_element_type=jnp.float32) + b2
        h2 = jnp.maximum(h2, 0.0)         # [C_mid, L] f32

        # conv3 (k=1, BN3 folded) + residual (identity == x, downsample=None) + ReLU.
        h3 = jnp.dot(w3, h2.astype(w3.dtype), preferred_element_type=jnp.float32) + b3
        out_ref[j] = jnp.maximum(h3 + x, 0.0).astype(out_ref.dtype)


def _fold_bn_wx(w, bn, eps=EPS):
    """w: [C_out, K] weight used as W @ X;  bn = (gamma, beta, mean, var) over C_out."""
    gamma, beta, mean, var = bn
    scale = gamma / jnp.sqrt(var + eps)
    w_f = (w * scale[:, None]).astype(jnp.float32)
    b_f = (beta - mean * scale)[:, None].astype(jnp.float32)
    return w_f, b_f


def bottleneck1d_forward(x, w1, bn1, w2, bn2, w3, bn3, *, compute_dtype=jnp.bfloat16):
    """x: [B, C_in, L] (PyTorch NCL).  w1: [C_mid, C_in], w2: [C_mid, C_mid, 3], w3: [4*C_mid, C_mid]."""
    B, C_in, L = x.shape
    C_mid = w1.shape[0]
    C_out = w3.shape[0]
    if C_out != C_in:
        raise ValueError("downsample=None requires in_channels == expansion * out_channels")
    # TODO(synk): stride > 1 and the optional `downsample` branch are not implemented (the
    # module's default stride=1 / downsample=None is the only shape-consistent configuration).

    # Fold inference-mode BatchNorm into each conv; build the stacked k=3 weight; cast to bf16.
    w1f, b1 = _fold_bn_wx(w1, bn1)
    w2_stacked = jnp.concatenate([w2[:, :, 0], w2[:, :, 1], w2[:, :, 2]], axis=1)  # [C_mid, 3*C_mid]
    w2f, b2 = _fold_bn_wx(w2_stacked, bn2)
    w3f, b3 = _fold_bn_wx(w3, bn3)
    w1c = w1f.astype(compute_dtype)
    w2c = w2f.astype(compute_dtype)
    w3c = w3f.astype(compute_dtype)

    # Precomputed boundary masks (hoisted out of the kernel's VPU hot path).
    lane = jnp.arange(L)
    mask_prev = (lane != 0).astype(jnp.float32)[None, :]       # zero left-pad column
    mask_next = (lane != L - 1).astype(jnp.float32)[None, :]   # zero right-pad column

    # ---- Tile selection: whole sequences per grid step, budgeted against this chip's VMEM ----
    try:
        vmem_cap = int(pltpu.get_tpu_info().vmem_capacity_bytes)
    except Exception:
        vmem_cap = 64 << 20          # conservative (v7x) fallback
    budget = int(vmem_cap * 0.4)
    # bytes per sequence per step: double-buffered in/out f32 tiles + in-kernel f32/bf16 temps
    per_seq = (2 * (C_in + C_out) + (C_in + C_out + 9 * C_mid)) * L * 4
    bb = 1
    for cand in range(1, B + 1):
        if B % cand:
            continue
        if cand * per_seq > budget:
            continue
        if cand * L > 8192:                      # keep per-step work in the measured sweet spot
            continue
        if B >= 2 and B // cand < 2:             # keep >= 2 grid steps so v7x uses both cores
            continue
        bb = cand
    num_tiles = B // bb
    # TODO(synk): within-sequence (L) tiling with a 1-column halo for very long sequences; the
    # current scheme requires one whole sequence to fit in VMEM.

    def seq_spec(c):
        return pl.BlockSpec((bb, c, L), lambda i: (i, 0, 0))

    def full2(a):
        return pl.BlockSpec(a.shape, lambda i: (0, 0))

    weight_bytes = sum(int(a.size * a.dtype.itemsize)
                       for a in (w1c, w2c, w3c, b1, b2, b3, mask_prev, mask_next))
    vmem_limit = 2 * bb * per_seq + 2 * weight_bytes + (4 << 20)
    vmem_limit = int(min(max(vmem_limit, 16 << 20), vmem_cap - (8 << 20)))

    kernel = functools.partial(bottleneck1d_kernel, batch_per_tile=bb)
    out = pl.pallas_call(
        kernel,
        out_shape=jax.ShapeDtypeStruct((B, C_out, L), x.dtype),
        grid_spec=pltpu.PrefetchScalarGridSpec(
            num_scalar_prefetch=0,
            grid=(num_tiles,),
            in_specs=[seq_spec(C_in),
                      full2(w1c), full2(b1),
                      full2(w2c), full2(b2),
                      full2(w3c), full2(b3),
                      full2(mask_prev), full2(mask_next)],
            out_specs=seq_spec(C_out),
        ),
        compiler_params=pltpu.CompilerParams(
            dimension_semantics=("parallel",),
            vmem_limit_bytes=vmem_limit),
    )(x, w1c, b1, w2c, b2, w3c, b3, mask_prev, mask_next)
    return out


def _reference(x, w1, bn1, w2, bn2, w3, bn3):
    hp = jax.lax.Precision.HIGHEST

    def bn(h, p):
        gamma, beta, mean, var = p
        scale = gamma / jnp.sqrt(var + EPS)
        return (h - mean[None, :, None]) * scale[None, :, None] + beta[None, :, None]

    L = x.shape[2]
    h = jax.nn.relu(bn(jnp.einsum("oc,bcl->bol", w1, x, precision=hp), bn1))
    hpad = jnp.pad(h, ((0, 0), (0, 0), (1, 1)))
    h2 = (jnp.einsum("oi,bil->bol", w2[:, :, 0], hpad[:, :, 0:L], precision=hp)
          + jnp.einsum("oi,bil->bol", w2[:, :, 1], hpad[:, :, 1:L + 1], precision=hp)
          + jnp.einsum("oi,bil->bol", w2[:, :, 2], hpad[:, :, 2:L + 2], precision=hp))
    h2 = jax.nn.relu(bn(h2, bn2))
    h3 = bn(jnp.einsum("oc,bcl->bol", w3, h2, precision=hp), bn3)
    return jax.nn.relu(h3 + x)


if __name__ == "__main__":
    # expansion = 4  ->  block output channels = 4*C_mid = C_in (needed for the residual).
    # L = 128 keeps the lane axis dense (unmasked vst) while staying small.
    B, C_in, C_mid, L = 2, 128, 32, 128

    key = jax.random.PRNGKey(0)
    ks = jax.random.split(key, 16)

    x = jax.random.normal(ks[0], (B, C_in, L), dtype=jnp.float32)

    def conv_w(k, o, i, kw=None):
        fan_in = i * (kw or 1)
        bound = 1.0 / (fan_in ** 0.5)
        shape = (o, i) if kw is None else (o, i, kw)
        return jax.random.uniform(k, shape, jnp.float32, -bound, bound)

    w1 = conv_w(ks[1], C_mid, C_in)            # Conv1d(C_in -> C_mid, k=1)
    w2 = conv_w(ks[2], C_mid, C_mid, 3)        # Conv1d(C_mid -> C_mid, k=3, p=1)
    w3 = conv_w(ks[3], 4 * C_mid, C_mid)       # Conv1d(C_mid -> 4*C_mid, k=1)

    def bn_params(k1, k2, k3, k4, c):
        gamma = jax.random.uniform(k1, (c,), jnp.float32, 0.5, 1.5)
        beta = 0.1 * jax.random.normal(k2, (c,), jnp.float32)
        mean = 0.1 * jax.random.normal(k3, (c,), jnp.float32)
        var = jax.random.uniform(k4, (c,), jnp.float32, 0.5, 1.5)
        return (gamma, beta, mean, var)

    bn1 = bn_params(ks[4], ks[5], ks[6], ks[7], C_mid)
    bn2 = bn_params(ks[8], ks[9], ks[10], ks[11], C_mid)
    bn3 = bn_params(ks[12], ks[13], ks[14], ks[15], 4 * C_mid)

    out = bottleneck1d_forward(x, w1, bn1, w2, bn2, w3, bn3)
    jax.block_until_ready(out)

    ref = _reference(x, w1, bn1, w2, bn2, w3, bn3)
    assert out.shape == ref.shape, (out.shape, ref.shape)
    max_err = float(jnp.max(jnp.abs(out - ref)))
    # Tolerance sized for bf16 MXU operands (reference is f32 HIGHEST precision).
    assert max_err < 5e-2, f"max abs error {max_err}"

    print("KERNEL_OK")
</pallas_src>

<mosaic_0001>
module attributes {stable_mosaic.version = 11 : i64} {
  func.func @bottleneck1d_kernel(%arg0: i32, %arg1: memref<1x128x128xf32, #tpu.memory_space<vmem>>, %arg2: memref<32x128xbf16, #tpu.memory_space<vmem>>, %arg3: memref<32x1xf32, #tpu.memory_space<vmem>>, %arg4: memref<32x96xbf16, #tpu.memory_space<vmem>>, %arg5: memref<32x1xf32, #tpu.memory_space<vmem>>, %arg6: memref<128x32xbf16, #tpu.memory_space<vmem>>, %arg7: memref<128x1xf32, #tpu.memory_space<vmem>>, %arg8: memref<1x128xf32, #tpu.memory_space<vmem>>, %arg9: memref<1x128xf32, #tpu.memory_space<vmem>>, %arg10: memref<1x128x128xf32, #tpu.memory_space<vmem>>) attributes {dimension_semantics = [#tpu.dimension_semantics<parallel>], iteration_bounds = array<i64: 2>, scalar_prefetch = 0 : i64, scratch_operands = 0 : i64, tpu.core_type = #tpu.core_type<tc>, window_params = [{transform_indices = @transform_0, window_bounds = array<i64: 1, 128, 128>}, {pipeline_mode = #tpu.pipeline_mode<synchronous>, transform_indices = @transform_1, window_bounds = array<i64: 32, 128>}, {pipeline_mode = #tpu.pipeline_mode<synchronous>, transform_indices = @transform_2, window_bounds = array<i64: 32, 1>}, {pipeline_mode = #tpu.pipeline_mode<synchronous>, transform_indices = @transform_3, window_bounds = array<i64: 32, 96>}, {pipeline_mode = #tpu.pipeline_mode<synchronous>, transform_indices = @transform_4, window_bounds = array<i64: 32, 1>}, {pipeline_mode = #tpu.pipeline_mode<synchronous>, transform_indices = @transform_5, window_bounds = array<i64: 128, 32>}, {pipeline_mode = #tpu.pipeline_mode<synchronous>, transform_indices = @transform_6, window_bounds = array<i64: 128, 1>}, {pipeline_mode = #tpu.pipeline_mode<synchronous>, transform_indices = @transform_7, window_bounds = array<i64: 1, 128>}, {pipeline_mode = #tpu.pipeline_mode<synchronous>, transform_indices = @transform_8, window_bounds = array<i64: 1, 128>}, {transform_indices = @transform_9, window_bounds = array<i64: 1, 128, 128>}]} {
    %c0 = arith.constant 0 : index
    %c0_0 = arith.constant 0 : index
    %0 = vector.load %arg2[%c0, %c0_0] : memref<32x128xbf16, #tpu.memory_space<vmem>>, vector<32x128xbf16>
    %c0_1 = arith.constant 0 : index
    %c0_2 = arith.constant 0 : index
    %1 = vector.load %arg4[%c0_1, %c0_2] : memref<32x96xbf16, #tpu.memory_space<vmem>>, vector<32x96xbf16>
    %c0_3 = arith.constant 0 : index
    %c0_4 = arith.constant 0 : index
    %2 = vector.load %arg6[%c0_3, %c0_4] : memref<128x32xbf16, #tpu.memory_space<vmem>>, vector<128x32xbf16>
    %c0_5 = arith.constant 0 : index
    %c0_6 = arith.constant 0 : index
    %3 = vector.load %arg3[%c0_5, %c0_6] : memref<32x1xf32, #tpu.memory_space<vmem>>, vector<32x1xf32>
    %c0_7 = arith.constant 0 : index
    %c0_8 = arith.constant 0 : index
    %4 = vector.load %arg5[%c0_7, %c0_8] : memref<32x1xf32, #tpu.memory_space<vmem>>, vector<32x1xf32>
    %c0_9 = arith.constant 0 : index
    %c0_10 = arith.constant 0 : index
    %5 = vector.load %arg7[%c0_9, %c0_10] : memref<128x1xf32, #tpu.memory_space<vmem>>, vector<128x1xf32>
    %c0_11 = arith.constant 0 : index
    %c0_12 = arith.constant 0 : index
    %6 = vector.load %arg8[%c0_11, %c0_12] : memref<1x128xf32, #tpu.memory_space<vmem>>, vector<1x128xf32>
    %c0_13 = arith.constant 0 : index
    %c0_14 = arith.constant 0 : index
    %7 = vector.load %arg9[%c0_13, %c0_14] : memref<1x128xf32, #tpu.memory_space<vmem>>, vector<1x128xf32>
    %c0_15 = arith.constant 0 : index
    %c0_16 = arith.constant 0 : index
    %c0_17 = arith.constant 0 : index
    %8 = vector.load %arg1[%c0_15, %c0_16, %c0_17] : memref<1x128x128xf32, #tpu.memory_space<vmem>>, vector<1x128x128xf32>
    %9 = vector.shape_cast %8 : vector<1x128x128xf32> to vector<128x128xf32>
    %10 = arith.truncf %9 : vector<128x128xf32> to vector<128x128xbf16>
    %cst = arith.constant dense<0.000000e+00> : vector<32x128xf32>
    %11 = tpu.matmul %0, %10, %cst {dimension_numbers = #tpu.dot_dimension_numbers<[1], [0], [0], [1], [0, 0, 1, 1], [], []>} : vector<32x128xbf16>, vector<128x128xbf16>, vector<32x128xf32> -> vector<32x128xf32>
    %12 = vector.broadcast %3 : vector<32x1xf32> to vector<32x128xf32>
    %13 = arith.addf %11, %12 : vector<32x128xf32>
    %cst_18 = arith.constant 0.000000e+00 : f32
    %14 = vector.broadcast %cst_18 : f32 to vector<32x128xf32>
    %15 = arith.maximumf %13, %14 : vector<32x128xf32>
    %c1_i32 = arith.constant 1 : i32
    %16 = tpu.dynamic_rotate %15 by %c1_i32 dim 1 : vector<32x128xf32>, i32 -> vector<32x128xf32>
    %17 = vector.broadcast %6 : vector<1x128xf32> to vector<32x128xf32>
    %18 = arith.mulf %16, %17 : vector<32x128xf32>
    %c127_i32 = arith.constant 127 : i32
    %19 = tpu.dynamic_rotate %15 by %c127_i32 dim 1 : vector<32x128xf32>, i32 -> vector<32x128xf32>
    %20 = vector.broadcast %7 : vector<1x128xf32> to vector<32x128xf32>
    %21 = arith.mulf %19, %20 : vector<32x128xf32>
    %22 = tpu.concatenate %18, %15, %21 in 0 : vector<32x128xf32>, vector<32x128xf32>, vector<32x128xf32> -> vector<96x128xf32>
    %23 = arith.truncf %22 : vector<96x128xf32> to vector<96x128xbf16>
    %cst_19 = arith.constant dense<0.000000e+00> : vector<32x128xf32>
    %24 = tpu.matmul %1, %23, %cst_19 {dimension_numbers = #tpu.dot_dimension_numbers<[1], [0], [0], [1], [0, 0, 1, 1], [], []>} : vector<32x96xbf16>, vector<96x128xbf16>, vector<32x128xf32> -> vector<32x128xf32>
    %25 = vector.broadcast %4 : vector<32x1xf32> to vector<32x128xf32>
    %26 = arith.addf %24, %25 : vector<32x128xf32>
    %cst_20 = arith.constant 0.000000e+00 : f32
    %27 = vector.broadcast %cst_20 : f32 to vector<32x128xf32>
    %28 = arith.maximumf %26, %27 : vector<32x128xf32>
    %29 = arith.truncf %28 : vector<32x128xf32> to vector<32x128xbf16>
    %cst_21 = arith.constant dense<0.000000e+00> : vector<128x128xf32>
    %30 = tpu.matmul %2, %29, %cst_21 {dimension_numbers = #tpu.dot_dimension_numbers<[1], [0], [0], [1], [0, 0, 1, 1], [], []>} : vector<128x32xbf16>, vector<32x128xbf16>, vector<128x128xf32> -> vector<128x128xf32>
    %31 = vector.broadcast %5 : vector<128x1xf32> to vector<128x128xf32>
    %32 = arith.addf %30, %31 : vector<128x128xf32>
    %33 = arith.addf %32, %9 : vector<128x128xf32>
    %cst_22 = arith.constant 0.000000e+00 : f32
    %34 = vector.broadcast %cst_22 : f32 to vector<128x128xf32>
    %35 = arith.maximumf %33, %34 : vector<128x128xf32>
    %c0_23 = arith.constant 0 : index
    %c0_24 = arith.constant 0 : index
    %c0_25 = arith.constant 0 : index
    %36 = vector.load %arg10[%c0_23, %c0_24, %c0_25] : memref<1x128x128xf32, #tpu.memory_space<vmem>>, vector<1x128x128xf32>
    %37 = vector.shape_cast %36 : vector<1x128x128xf32> to vector<128x128xf32>
    %38 = vector.shape_cast %35 : vector<128x128xf32> to vector<1x128x128xf32>
    tpu.vector_store %arg10[%c0_23, %c0_24, %c0_25], %38 {strides = array<i32>} : memref<1x128x128xf32, #tpu.memory_space<vmem>>, vector<1x128x128xf32>,
    return
  }
  func.func @transform_0(%arg0: i32) -> (i32, i32, i32) {
    %c0_i32 = arith.constant 0 : i32
    %c0_i32_0 = arith.constant 0 : i32
    %c0_i32_1 = arith.constant 0 : i32
    return %arg0, %c0_i32, %c0_i32_0 : i32, i32, i32
  }
  func.func @transform_1(%arg0: i32) -> (i32, i32) {
    %c0_i32 = arith.constant 0 : i32
    %c0_i32_0 = arith.constant 0 : i32
    %c0_i32_1 = arith.constant 0 : i32
    return %c0_i32, %c0_i32_0 : i32, i32
  }
  func.func @transform_2(%arg0: i32) -> (i32, i32) {
    %c0_i32 = arith.constant 0 : i32
    %c0_i32_0 = arith.constant 0 : i32
    %c0_i32_1 = arith.constant 0 : i32
    return %c0_i32, %c0_i32_0 : i32, i32
  }
  func.func @transform_3(%arg0: i32) -> (i32, i32) {
    %c0_i32 = arith.constant 0 : i32
    %c0_i32_0 = arith.constant 0 : i32
    %c0_i32_1 = arith.constant 0 : i32
    return %c0_i32, %c0_i32_0 : i32, i32
  }
  func.func @transform_4(%arg0: i32) -> (i32, i32) {
    %c0_i32 = arith.constant 0 : i32
    %c0_i32_0 = arith.constant 0 : i32
    %c0_i32_1 = arith.constant 0 : i32
    return %c0_i32, %c0_i32_0 : i32, i32
  }
  func.func @transform_5(%arg0: i32) -> (i32, i32) {
    %c0_i32 = arith.constant 0 : i32
    %c0_i32_0 = arith.constant 0 : i32
    %c0_i32_1 = arith.constant 0 : i32
    return %c0_i32, %c0_i32_0 : i32, i32
  }
  func.func @transform_6(%arg0: i32) -> (i32, i32) {
    %c0_i32 = arith.constant 0 : i32
    %c0_i32_0 = arith.constant 0 : i32
    %c0_i32_1 = arith.constant 0 : i32
    return %c0_i32, %c0_i32_0 : i32, i32
  }
  func.func @transform_7(%arg0: i32) -> (i32, i32) {
    %c0_i32 = arith.constant 0 : i32
    %c0_i32_0 = arith.constant 0 : i32
    %c0_i32_1 = arith.constant 0 : i32
    return %c0_i32, %c0_i32_0 : i32, i32
  }
  func.func @transform_8(%arg0: i32) -> (i32, i32) {
    %c0_i32 = arith.constant 0 : i32
    %c0_i32_0 = arith.constant 0 : i32
    %c0_i32_1 = arith.constant 0 : i32
    return %c0_i32, %c0_i32_0 : i32, i32
  }
  func.func @transform_9(%arg0: i32) -> (i32, i32, i32) {
    %c0_i32 = arith.constant 0 : i32
    %c0_i32_0 = arith.constant 0 : i32
    %c0_i32_1 = arith.constant 0 : i32
    return %arg0, %c0_i32, %c0_i32_0 : i32, i32, i32
  }
}

</mosaic_0001>

<llo_original>
// kernel: tpu_custom_call.1
$region0: #{tpu_custom_call.1}
  #allocation0 [shape = 'u32[]', space=smem, size = 0x4, offset = 0x4, fixed_abs, tag = 'smem constant byte address 0x4 - core index']
  #allocation1 [shape = 'u32[144,128]{1,0:T(1,128)}', space=vmem, size = 0x12000, scoped, tag = 'internal scratch']
  %s0 = inlined_call_operand.vmem [shape: f32[2,128,128], index: 0, kind: input, shape index: {}]
  %s1 = inlined_call_operand.hbm [shape: bf16[32,128], index: 1, kind: input, shape index: {}]
  %s2 = inlined_call_operand.vmem [shape: f32[32,1], index: 2, kind: input, shape index: {}]
  %s3 = inlined_call_operand.hbm [shape: bf16[32,96], index: 3, kind: input, shape index: {}]
  %s4 = inlined_call_operand.vmem [shape: f32[32,1], index: 4, kind: input, shape index: {}]
  %s5 = inlined_call_operand.vmem [shape: bf16[128,32], index: 5, kind: input, shape index: {}]
  %s6 = inlined_call_operand.vmem [shape: f32[128,1], index: 6, kind: input, shape index: {}]
  %s7 = inlined_call_operand.vmem [shape: f32[1,128], index: 7, kind: input, shape index: {}]
  %s8 = inlined_call_operand.vmem [shape: f32[1,128], index: 8, kind: input, shape index: {}]
  %s9 = inlined_call_operand.hbm [shape: f32[2,128,128], index: 9, kind: output, shape index: {}]
  %s10 = sld [smem:[#allocation0]]
  $region77: #{tpu_custom_call.1} parent=0
    _
  %s12 = ssub.s32 1, %s10
  %s13 = scalar_select 0, %s12, %s10
  $region1: #{tpu_custom_call.1} parent=0
    #allocation2 [shape = 'u8[8192]{0}', space=vmem, size = 0x2000, scoped, tag = 'input window, operand 1, single buffered']
    #allocation3 [shape = 's32[2]{0}', space=sflag, size = 0x8, scoped, tag = 'scoped memory for tpu_custom_call.1']
    #allocation4 [shape = 's32[2]{0}', space=sflag, size = 0x8, scoped, tag = 'scoped memory for tpu_custom_call.1']
    #allocation5 [shape = 'u8[8192]{0}', space=vmem, size = 0x2000, scoped, tag = 'input window, operand 3, single buffered']
    #allocation6 [shape = 's32[1]{0}', space=sflag, size = 0x4, scoped, tag = 'scoped memory for tpu_custom_call.1']
    #allocation7 [shape = 'u8[131072]{0}', space=vmem, size = 0x20000, scoped, tag = 'output window, operand 0']
    %14 = vsyncpa [#allocation3], 0
    %15 = vsyncpa [#allocation6], 0
    %16 = vsyncpa [#allocation4], 0
    %s17 = scalar_lea.sflag [#allocation4], 1
    %18 = vsyncpa %s17, 0
    loop: start=0, step=1, limit=4
    $region2: #{tpu_custom_call.1} parent=1 // loop_pre_header
      _
    $region3: #{tpu_custom_call.1} parent=1 // loop_header
      %s20 = sphi 0, %s24
      %p21 = scmp.ge.s32.totalorder %s20, 4
      %s30 = sphi 0, %s32
      %s33 = sphi 0, %s30
      %s34 = sphi 0, %s33
      %s50 = sphi 0, %s34
      %s54 = sphi 0, %s54
      %s56 = sphi 0, %s54
      %s57 = sphi 0, %s56
      %s71 = sphi 0, %s57
      %s75 = sphi 0, %s75
      %s77 = sphi 0, %s75
      %s78 = sphi 0, %s77
      %s92 = sphi 0, %s78
      %s96 = sphi 0, %s96
      %s98 = sphi 0, %s96
      %s99 = sphi 0, %s98
      %s113 = sphi 0, %s99
      %s117 = sphi 0, %s117
      %s119 = sphi 0, %s117
      %s120 = sphi 0, %s119
      %s134 = sphi 0, %s120
      %s138 = sphi 0, %s138
      %s140 = sphi 0, %s138
      %s141 = sphi 0, %s140
      %s155 = sphi 0, %s141
      %s159 = sphi 0, %s159
      %s161 = sphi 0, %s159
      %s162 = sphi 0, %s161
      %s176 = sphi 0, %s162
      %s180 = sphi 0, %s180
      %s182 = sphi 0, %s180
      %s183 = sphi 0, %s182
      %s197 = sphi 0, %s183
      %s201 = sphi 0, %s201
      %s203 = sphi 0, %s201
      %s204 = sphi 0, %s203
      %s218 = sphi 0, %s204
      %s224 = sphi 0, %s226
      %s227 = sphi 0, %s224
      %s228 = sphi 0, %s227
      %s244 = sphi 0, %s228
    $region4: #{tpu_custom_call.1} parent=1 // loop_header_branch
      %23 = sbr.rel (%p21) target = $region8
    $region5: #{tpu_custom_call.1} parent=1 // loop_body
      %s25 = ssub.s32 %s20, 1
      %s26 = ssub.s32 %s20, 2
      %s27 = sadd.s32 %s20, 1
      %s28 = ssub.s32 %s20, %s27
      %p29 = scmp.eq.s32.totalorder %s28, 0
      %s31 = sadd.s32 %s30, 1
      %s32 = scalar_select %p29, %s30, %s31
      %p35 = pneg %p29
      %p36 = scmp.eq.s32.totalorder %s20, 1
      %p37 = por %p35, %p36
      %p38 = scmp.ne.s32.totalorder %s30, %s33
      %p39 = scmp.eq.s32.totalorder %s20, 0
      %p40 = por %p38, %p39
      %p41 = scmp.ne.s32.totalorder %s30, %s33
      %p42 = scmp.eq.s32.totalorder %s25, 1
      %p43 = por %p41, %p42
      %p44 = scmp.ne.s32.totalorder %s33, %s34
      %p45 = scmp.eq.s32.totalorder %s25, 0
      %p46 = por %p44, %p45
      %p47 = scmp.ne.s32.totalorder %s33, %s34
      %p48 = scmp.eq.s32.totalorder %s26, 1
      %p49 = por %p47, %p48
      %p51 = scmp.ne.s32.totalorder %s34, %s50
      %p52 = scmp.eq.s32.totalorder %s26, 0
      %p53 = por %p51, %p52
      %s55 = sadd.s32 %s54, 1
      %p58 = scmp.eq.s32.totalorder %s20, 1
      %p59 = scmp.ne.s32.totalorder %s54, %s56
      %p60 = scmp.eq.s32.totalorder %s20, 0
      %p61 = por %p59, %p60
      %p62 = scmp.ne.s32.totalorder %s54, %s56
      %p63 = scmp.eq.s32.totalorder %s25, 1
      %p64 = por %p62, %p63
      %p65 = scmp.ne.s32.totalorder %s56, %s57
      %p66 = scmp.eq.s32.totalorder %s25, 0
      %p67 = por %p65, %p66
      %p68 = scmp.ne.s32.totalorder %s56, %s57
      %p69 = scmp.eq.s32.totalorder %s26, 1
      %p70 = por %p68, %p69
      %p72 = scmp.ne.s32.totalorder %s57, %s71
      %p73 = scmp.eq.s32.totalorder %s26, 0
      %p74 = por %p72, %p73
      %s76 = sadd.s32 %s75, 1
      %p79 = scmp.eq.s32.totalorder %s20, 1
      %p80 = scmp.ne.s32.totalorder %s75, %s77
      %p81 = scmp.eq.s32.totalorder %s20, 0
      %p82 = por %p80, %p81
      %p83 = scmp.ne.s32.totalorder %s75, %s77
      %p84 = scmp.eq.s32.totalorder %s25, 1
      %p85 = por %p83, %p84
      %p86 = scmp.ne.s32.totalorder %s77, %s78
      %p87 = scmp.eq.s32.totalorder %s25, 0
      %p88 = por %p86, %p87
      %p89 = scmp.ne.s32.totalorder %s77, %s78
      %p90 = scmp.eq.s32.totalorder %s26, 1
      %p91 = por %p89, %p90
      %p93 = scmp.ne.s32.totalorder %s78, %s92
      %p94 = scmp.eq.s32.totalorder %s26, 0
      %p95 = por %p93, %p94
      %s97 = sadd.s32 %s96, 1
      %p100 = scmp.eq.s32.totalorder %s20, 1
      %p101 = scmp.ne.s32.totalorder %s96, %s98
      %p102 = scmp.eq.s32.totalorder %s20, 0
      %p103 = por %p101, %p102
      %p104 = scmp.ne.s32.totalorder %s96, %s98
      %p105 = scmp.eq.s32.totalorder %s25, 1
      %p106 = por %p104, %p105
      %p107 = scmp.ne.s32.totalorder %s98, %s99
      %p108 = scmp.eq.s32.totalorder %s25, 0
      %p109 = por %p107, %p108
      %p110 = scmp.ne.s32.totalorder %s98, %s99
      %p111 = scmp.eq.s32.totalorder %s26, 1
      %p112 = por %p110, %p111
      %p114 = scmp.ne.s32.totalorder %s99, %s113
      %p115 = scmp.eq.s32.totalorder %s26, 0
      %p116 = por %p114, %p115
      %s118 = sadd.s32 %s117, 1
      %p121 = scmp.eq.s32.totalorder %s20, 1
      %p122 = scmp.ne.s32.totalorder %s117, %s119
      %p123 = scmp.eq.s32.totalorder %s20, 0
      %p124 = por %p122, %p123
      %p125 = scmp.ne.s32.totalorder %s117, %s119
      %p126 = scmp.eq.s32.totalorder %s25, 1
      %p127 = por %p125, %p126
      %p128 = scmp.ne.s32.totalorder %s119, %s120
      %p129 = scmp.eq.s32.totalorder %s25, 0
      %p130 = por %p128, %p129
      %p131 = scmp.ne.s32.totalorder %s119, %s120
      %p132 = scmp.eq.s32.totalorder %s26, 1
      %p133 = por %p131, %p132
      %p135 = scmp.ne.s32.totalorder %s120, %s134
      %p136 = scmp.eq.s32.totalorder %s26, 0
      %p137 = por %p135, %p136
      %s139 = sadd.s32 %s138, 1
      %p142 = scmp.eq.s32.totalorder %s20, 1
      %p143 = scmp.ne.s32.totalorder %s138, %s140
      %p144 = scmp.eq.s32.totalorder %s20, 0
      %p145 = por %p143, %p144
      %p146 = scmp.ne.s32.totalorder %s138, %s140
      %p147 = scmp.eq.s32.totalorder %s25, 1
      %p148 = por %p146, %p147
      %p149 = scmp.ne.s32.totalorder %s140, %s141
      %p150 = scmp.eq.s32.totalorder %s25, 0
      %p151 = por %p149, %p150
      %p152 = scmp.ne.s32.totalorder %s140, %s141
      %p153 = scmp.eq.s32.totalorder %s26, 1
      %p154 = por %p152, %p153
      %p156 = scmp.ne.s32.totalorder %s141, %s155
      %p157 = scmp.eq.s32.totalorder %s26, 0
      %p158 = por %p156, %p157
      %s160 = sadd.s32 %s159, 1
      %p163 = scmp.eq.s32.totalorder %s20, 1
      %p164 = scmp.ne.s32.totalorder %s159, %s161
      %p165 = scmp.eq.s32.totalorder %s20, 0
      %p166 = por %p164, %p165
      %p167 = scmp.ne.s32.totalorder %s159, %s161
      %p168 = scmp.eq.s32.totalorder %s25, 1
      %p169 = por %p167, %p168
      %p170 = scmp.ne.s32.totalorder %s161, %s162
      %p171 = scmp.eq.s32.totalorder %s25, 0
      %p172 = por %p170, %p171
      %p173 = scmp.ne.s32.totalorder %s161, %s162
      %p174 = scmp.eq.s32.totalorder %s26, 1
      %p175 = por %p173, %p174
      %p177 = scmp.ne.s32.totalorder %s162, %s176
      %p178 = scmp.eq.s32.totalorder %s26, 0
      %p179 = por %p177, %p178
      %s181 = sadd.s32 %s180, 1
      %p184 = scmp.eq.s32.totalorder %s20, 1
      %p185 = scmp.ne.s32.totalorder %s180, %s182
      %p186 = scmp.eq.s32.totalorder %s20, 0
      %p187 = por %p185, %p186
      %p188 = scmp.ne.s32.totalorder %s180, %s182
      %p189 = scmp.eq.s32.totalorder %s25, 1
      %p190 = por %p188, %p189
      %p191 = scmp.ne.s32.totalorder %s182, %s183
      %p192 = scmp.eq.s32.totalorder %s25, 0
      %p193 = por %p191, %p192
      %p194 = scmp.ne.s32.totalorder %s182, %s183
      %p195 = scmp.eq.s32.totalorder %s26, 1
      %p196 = por %p194, %p195
      %p198 = scmp.ne.s32.totalorder %s183, %s197
      %p199 = scmp.eq.s32.totalorder %s26, 0
      %p200 = por %p198, %p199
      %s202 = sadd.s32 %s201, 1
      %p205 = scmp.eq.s32.totalorder %s20, 1
      %p206 = scmp.ne.s32.totalorder %s201, %s203
      %p207 = scmp.eq.s32.totalorder %s20, 0
      %p208 = por %p206, %p207
      %p209 = scmp.ne.s32.totalorder %s201, %s203
      %p210 = scmp.eq.s32.totalorder %s25, 1
      %p211 = por %p209, %p210
      %p212 = scmp.ne.s32.totalorder %s203, %s204
      %p213 = scmp.eq.s32.totalorder %s25, 0
      %p214 = por %p212, %p213
      %p215 = scmp.ne.s32.totalorder %s203, %s204
      %p216 = scmp.eq.s32.totalorder %s26, 1
      %p217 = por %p215, %p216
      %p219 = scmp.ne.s32.totalorder %s204, %s218
      %p220 = scmp.eq.s32.totalorder %s26, 0
      %p221 = por %p219, %p220
      %s222 = ssub.s32 %s20, %s27
      %p223 = scmp.eq.s32.totalorder %s222, 0
      %s225 = sadd.s32 %s224, 1
      %s226 = scalar_select %p223, %s224, %s225
      %p229 = pneg %p223
      %p230 = scmp.eq.s32.totalorder %s20, 1
      %p231 = por %p229, %p230
      %p232 = scmp.ne.s32.totalorder %s224, %s227
      %p233 = scmp.eq.s32.totalorder %s20, 0
      %p234 = por %p232, %p233
      %p235 = scmp.ne.s32.totalorder %s224, %s227
      %p236 = scmp.eq.s32.totalorder %s25, 1
      %p237 = por %p235, %p236
      %p238 = scmp.ne.s32.totalorder %s227, %s228
      %p239 = scmp.eq.s32.totalorder %s25, 0
      %p240 = por %p238, %p239
      %p241 = scmp.ne.s32.totalorder %s227, %s228
      %p242 = scmp.eq.s32.totalorder %s26, 1
      %p243 = por %p241, %p242
      %p245 = scmp.ne.s32.totalorder %s228, %s244
      %p246 = scmp.eq.s32.totalorder %s26, 0
      %p247 = por %p245, %p246
      %p248 = scmp.le.s32.totalorder 1, %s20
      %p249 = scmp.lt.s32.totalorder %s20, 3
      %p250 = pnand %p248, %p249
      %p251 = pneg %p250
      // Predicated region
      $region9: #{tpu_custom_call.1} parent=5 // pred_check
        _
      $region10: #{tpu_custom_call.1} parent=5 // pred_check_branch
        %253 = sbr.rel (%p250) target = $region12
      $region11: #{tpu_custom_call.1} parent=5 // pred_region
        %s254 = ssub.s32 %s20, 1
        // Predicated region
        $region13: #{tpu_custom_call.1} parent=11 // pred_check
          %p255 = pneg %p67
        $region14: #{tpu_custom_call.1} parent=11 // pred_check_branch
          %257 = sbr.rel (%p255) target = $region16
        $region15: #{tpu_custom_call.1} parent=11 // pred_region
          %s259 = ssub.s32 256, 256
          %260 = vsyncadd [#allocation3], %s259
          %s261 = sshll.u32 [#allocation2], 4
          %s262 = int_to_ptr.vmem [resolvable:$true] %s261
          %267 = dma.hbm_to_vmem [thread:$0]  %s1, 256, %s262, [#allocation3], 64, 64, 4
        $region16: #{tpu_custom_call.1} parent=11 // pred_fallthru
          _
        // Predicated region
        $region17: #{tpu_custom_call.1} parent=11 // pred_check
          %p268 = pneg %p88
        $region18: #{tpu_custom_call.1} parent=11 // pred_check_branch
          %270 = sbr.rel (%p268) target = $region20
        $region19: #{tpu_custom_call.1} parent=11 // pred_region
          _
        $region20: #{tpu_custom_call.1} parent=11 // pred_fallthru
          _
        // Predicated region
        $region21: #{tpu_custom_call.1} parent=11 // pred_check
          %p271 = pneg %p109
        $region22: #{tpu_custom_call.1} parent=11 // pred_check_branch
          %273 = sbr.rel (%p271) target = $region24
        $region23: #{tpu_custom_call.1} parent=11 // pred_region
          %s275 = ssub.s32 256, 256
          %276 = vsyncadd [#allocation6], %s275
          %s277 = sshll.u32 [#allocation5], 4
          %s278 = int_to_ptr.vmem [resolvable:$true] %s277
          %283 = dma.hbm_to_vmem [thread:$0]  %s3, 256, %s278, [#allocation6], 64, 64, 4
        $region24: #{tpu_custom_call.1} parent=11 // pred_fallthru
          _
        // Predicated region
        $region25: #{tpu_custom_call.1} parent=11 // pred_check
          %p284 = pneg %p130
        $region26: #{tpu_custom_call.1} parent=11 // pred_check_branch
          %286 = sbr.rel (%p284) target = $region28
        $region27: #{tpu_custom_call.1} parent=11 // pred_region
          _
        $region28: #{tpu_custom_call.1} parent=11 // pred_fallthru
          _
        // Predicated region
        $region29: #{tpu_custom_call.1} parent=11 // pred_check
          %p287 = pneg %p151
        $region30: #{tpu_custom_call.1} parent=11 // pred_check_branch
          %289 = sbr.rel (%p287) target = $region32
        $region31: #{tpu_custom_call.1} parent=11 // pred_region
          _
        $region32: #{tpu_custom_call.1} parent=11 // pred_fallthru
          _
        // Predicated region
        $region33: #{tpu_custom_call.1} parent=11 // pred_check
          %p290 = pneg %p172
        $region34: #{tpu_custom_call.1} parent=11 // pred_check_branch
          %292 = sbr.rel (%p290) target = $region36
        $region35: #{tpu_custom_call.1} parent=11 // pred_region
          _
        $region36: #{tpu_custom_call.1} parent=11 // pred_fallthru
          _
        // Predicated region
        $region37: #{tpu_custom_call.1} parent=11 // pred_check
          %p293 = pneg %p193
        $region38: #{tpu_custom_call.1} parent=11 // pred_check_branch
          %295 = sbr.rel (%p293) target = $region40
        $region39: #{tpu_custom_call.1} parent=11 // pred_region
          _
        $region40: #{tpu_custom_call.1} parent=11 // pred_fallthru
          _
        // Predicated region
        $region41: #{tpu_custom_call.1} parent=11 // pred_check
          %p296 = pneg %p214
        $region42: #{tpu_custom_call.1} parent=11 // pred_check_branch
          %298 = sbr.rel (%p296) target = $region44
        $region43: #{tpu_custom_call.1} parent=11 // pred_region
          _
        $region44: #{tpu_custom_call.1} parent=11 // pred_fallthru
          _
      $region12: #{tpu_custom_call.1} parent=5 // pred_fallthru
        _
      %p299 = scmp.lt.s32.totalorder %s20, 2
      // Predicated region
      $region45: #{tpu_custom_call.1} parent=5 // pred_check
        %p300 = pneg %p299
      $region46: #{tpu_custom_call.1} parent=5 // pred_check_branch
        %302 = sbr.rel (%p300) target = $region48
      $region47: #{tpu_custom_call.1} parent=5 // pred_region
        // Predicated region
        $region49: #{tpu_custom_call.1} parent=47 // pred_check
          %p303 = pneg %p40
        $region50: #{tpu_custom_call.1} parent=47 // pred_check_branch
          %305 = sbr.rel (%p303) target = $region52
        $region51: #{tpu_custom_call.1} parent=47 // pred_region
          %p306 = scmp.lt.s32.totalorder %s20, 1
          %s307 = scalar_select %p306, %s20, 1
          %s308 = smul.addr %s307, 16
          %s309 = smul.addr %s308, 8
          %s310 = scalar_lea.vmem %s0, %s309
        $region52: #{tpu_custom_call.1} parent=47 // pred_fallthru
          _
      $region48: #{tpu_custom_call.1} parent=5 // pred_fallthru
        _
      %p311 = scmp.le.s32.totalorder 1, %s20
      %p312 = scmp.lt.s32.totalorder %s20, 3
      %p313 = pnand %p311, %p312
      %p314 = pneg %p313
      // Predicated region
      $region53: #{tpu_custom_call.1} parent=5 // pred_check
        _
      $region54: #{tpu_custom_call.1} parent=5 // pred_check_branch
        %316 = sbr.rel (%p313) target = $region56
      $region55: #{tpu_custom_call.1} parent=5 // pred_region
        %s317 = ssub.s32 %s20, 1
        // Predicated region
        $region57: #{tpu_custom_call.1} parent=55 // pred_check
          %p318 = pneg %p67
        $region58: #{tpu_custom_call.1} parent=55 // pred_check_branch
          %320 = sbr.rel (%p318) target = $region60
        $region59: #{tpu_custom_call.1} parent=55 // pred_region
          %321 = dma.done [#allocation3], 256
        $region60: #{tpu_custom_call.1} parent=55 // pred_fallthru
          _
        // Predicated region
        $region61: #{tpu_custom_call.1} parent=55 // pred_check
          %p322 = pneg %p109
        $region62: #{tpu_custom_call.1} parent=55 // pred_check_branch
          %324 = sbr.rel (%p322) target = $region64
        $region63: #{tpu_custom_call.1} parent=55 // pred_region
          %325 = dma.done [#allocation6], 256
        $region64: #{tpu_custom_call.1} parent=55 // pred_fallthru
          _
        %p326 = scmp.lt.s32.totalorder %s25, 1
        %s327 = scalar_select %p326, %s25, 1
        %s328 = smul.addr %s327, 16
        %s329 = smul.addr %s328, 8
        %s330 = scalar_lea.vmem %s0, %s329
        %p331 = pneg %p46
        %p332 = pneg %p43
        %p333 = pneg %p67
        %p334 = pneg %p64
        %p335 = pneg %p88
        %p336 = pneg %p85
        %p337 = pneg %p109
        %p338 = pneg %p106
        %p339 = pneg %p130
        %p340 = pneg %p127
        %p341 = pneg %p151
        %p342 = pneg %p148
        %p343 = pneg %p172
        %p344 = pneg %p169
        %p345 = pneg %p193
        %p346 = pneg %p190
        %p347 = pneg %p214
        %p348 = pneg %p211
        %p349 = pneg %p240
        %p350 = pneg %p237
        %s351 = sand.u32 %s227, 1
        %s352 = scalar_lea.sflag [#allocation4], %s351
        %s353 = sand.u32 %s227, 1
        %s354 = smul.addr %s353, 128
        %s355 = scalar_lea.vmem [#allocation7], %s354
        %p356 = scmp.lt.s32.totalorder %s25, 1
        %s357 = scalar_select %p356, %s25, 1
        %s358 = smul.addr %s357, 16
        %s359 = smul.addr %s358, 8
        %s360 = scalar_lea.vmem %s0, %s359
        %v362 = vld [vmem:[#allocation2] sm:$0xf]
        %v363 = vld [vmem:[#allocation2 + $0x4] sm:$0xf]
        %v364 = vld [vmem:[#allocation2 + $0x8] sm:$0xf]
        %v365 = vld [vmem:[#allocation2 + $0xc] sm:$0xf]
        %v366 = vld [vmem:[#allocation5] sm:$0xf]
        %v367 = vld [vmem:[#allocation5 + $0x4] sm:$0xf]
        %v368 = vld [vmem:[#allocation5 + $0x8] sm:$0xf]
        %v369 = vld [vmem:[#allocation5 + $0xc] sm:$0xf]
        %v370 = vld [vmem:[%s5] sm:$0xf]
        %v371 = vld [vmem:[%s5 + $0x4] sm:$0xf]
        %v372 = vld [vmem:[%s5 + $0x8] sm:$0xf]
        %v373 = vld [vmem:[%s5 + $0xc] sm:$0xf]
        %v374 = vld [vmem:[%s5 + $0x10] sm:$0xf]
        %v375 = vld [vmem:[%s5 + $0x14] sm:$0xf]
        %v376 = vld [vmem:[%s5 + $0x18] sm:$0xf]
        %v377 = vld [vmem:[%s5 + $0x1c] sm:$0xf]
        %v378 = vld [vmem:[%s5 + $0x20] sm:$0xf]
        %v379 = vld [vmem:[%s5 + $0x24] sm:$0xf]
        %v380 = vld [vmem:[%s5 + $0x28] sm:$0xf]
        %v381 = vld [vmem:[%s5 + $0x2c] sm:$0xf]
        %v382 = vld [vmem:[%s5 + $0x30] sm:$0xf]
        %v383 = vld [vmem:[%s5 + $0x34] sm:$0xf]
        %v384 = vld [vmem:[%s5 + $0x38] sm:$0xf]
        %v385 = vld [vmem:[%s5 + $0x3c] sm:$0xf]
        %v386 = vld [vmem:[%s2] sm:$0xff]
        %v387 = vld [vmem:[%s2 + $0x8] sm:$0xff]
        %v388 = vld [vmem:[%s2 + $0x10] sm:$0xff]
        %v389 = vld [vmem:[%s2 + $0x18] sm:$0xff]
        %v390 = vld [vmem:[%s4] sm:$0xff]
        %v391 = vld [vmem:[%s4 + $0x8] sm:$0xff]
        %v392 = vld [vmem:[%s4 + $0x10] sm:$0xff]
        %v393 = vld [vmem:[%s4 + $0x18] sm:$0xff]
        %v394 = vld [vmem:[%s6] sm:$0xff]
        %v395 = vld [vmem:[%s6 + $0x8] sm:$0xff]
        %v396 = vld [vmem:[%s6 + $0x10] sm:$0xff]
        %v397 = vld [vmem:[%s6 + $0x18] sm:$0xff]
        %v398 = vld [vmem:[%s6 + $0x20] sm:$0xff]
        %v399 = vld [vmem:[%s6 + $0x28] sm:$0xff]
        %v400 = vld [vmem:[%s6 + $0x30] sm:$0xff]
        %v401 = vld [vmem:[%s6 + $0x38] sm:$0xff]
        %v402 = vld [vmem:[%s6 + $0x40] sm:$0xff]
        %v403 = vld [vmem:[%s6 + $0x48] sm:$0xff]
        %v404 = vld [vmem:[%s6 + $0x50] sm:$0xff]
        %v405 = vld [vmem:[%s6 + $0x58] sm:$0xff]
        %v406 = vld [vmem:[%s6 + $0x60] sm:$0xff]
        %v407 = vld [vmem:[%s6 + $0x68] sm:$0xff]
        %v408 = vld [vmem:[%s6 + $0x70] sm:$0xff]
        %v409 = vld [vmem:[%s6 + $0x78] sm:$0xff]
        %v410 = vld [vmem:[%s7] sm:$0x1]
        %v411 = vld [vmem:[%s8] sm:$0x1]
        %v412 = vld [vmem:[%s360] sm:$0xff]
        %v413 = vld [vmem:[%s360 + $0x8] sm:$0xff]
        %v414 = vld [vmem:[%s360 + $0x10] sm:$0xff]
        %v415 = vld [vmem:[%s360 + $0x18] sm:$0xff]
        %v416 = vld [vmem:[%s360 + $0x20] sm:$0xff]
        %v417 = vld [vmem:[%s360 + $0x28] sm:$0xff]
        %v418 = vld [vmem:[%s360 + $0x30] sm:$0xff]
        %v419 = vld [vmem:[%s360 + $0x38] sm:$0xff]
        %v420 = vld [vmem:[%s360 + $0x40] sm:$0xff]
        %v421 = vld [vmem:[%s360 + $0x48] sm:$0xff]
        %v422 = vld [vmem:[%s360 + $0x50] sm:$0xff]
        %v423 = vld [vmem:[%s360 + $0x58] sm:$0xff]
        %v424 = vld [vmem:[%s360 + $0x60] sm:$0xff]
        %v425 = vld [vmem:[%s360 + $0x68] sm:$0xff]
        %v426 = vld [vmem:[%s360 + $0x70] sm:$0xff]
        %v427 = vld [vmem:[%s360 + $0x78] sm:$0xff]
        %v428 = vpack.c.bf16 %v413, %v412
        %v429 = vpack.c.bf16 %v415, %v414
        %v430 = vpack.c.bf16 %v417, %v416
        %v431 = vpack.c.bf16 %v419, %v418
        %v432 = vpack.c.bf16 %v421, %v420
        %v433 = vpack.c.bf16 %v423, %v422
        %v434 = vpack.c.bf16 %v425, %v424
        %v435 = vpack.c.bf16 %v427, %v426
        %437 = vset.pattern.permute.xlu0 0
        %438 = vperm.xlu0 %437, %v386
        %v439 = vpop.permute.xlu0 %438
        %442 = vset.pattern.permute.xlu0 0
        %443 = vperm.xlu0 %442, %v387
        %v444 = vpop.permute.xlu0 %443
        %447 = vset.pattern.permute.xlu0 0
        %448 = vperm.xlu0 %447, %v388
        %v449 = vpop.permute.xlu0 %448
        %452 = vset.pattern.permute.xlu0 0
        %453 = vperm.xlu0 %452, %v389
        %v454 = vpop.permute.xlu0 %453
        %v460 = vunpack.c.l.b16 %v362
        %v461 = vunpack.c.l.b16 %v363
        %v462 = vunpack.c.l.b16 %v364
        %v463 = vunpack.c.l.b16 %v365
        %v464 = vpack.c.b16 %v461, %v460
        %v465 = vpack.c.b16 %v463, %v462
        %468 = vmatprep.subr.bf16.mxu0 0
        %469 = vmatpush1.bf16.msra.mxu0 %v428
        %470 = vmatprep.subr.bf16.mxu0 0
        %471 = vmatpush1.bf16.msra.mxu0 %v429
        %472 = vmatprep.subr.bf16.mxu0 0
        %473 = vmatpush1.bf16.msra.mxu0 %v430
        %474 = vmatprep.subr.bf16.mxu0 0
        %475 = vmatpush1.bf16.msra.mxu0 %v431
        %476 = vmatprep.subr.bf16.mxu0 0
        %477 = vmatpush1.bf16.msra.mxu0 %v432
        %478 = vmatprep.subr.bf16.mxu0 0
        %479 = vmatpush1.bf16.msra.mxu0 %v433
        %480 = vmatprep.subr.bf16.mxu0 0
        %481 = vmatpush1.bf16.msra.mxu0 %v434
        %482 = vmatprep.subr.bf16.mxu0 0
        %483 = vmatpush1.bf16.msra.mxu0 %v435
        %484 = vmatprep.subr.bf16.mxu0 0
        %485 = vmatpush1.bf16.msra.mxu0 0
        %486 = vmatprep.subr.bf16.mxu0 0
        %487 = vmatpush1.bf16.msra.mxu0 0
        %488 = vmatprep.subr.bf16.mxu0 0
        %489 = vmatpush1.bf16.msra.mxu0 0
        %490 = vmatprep.subr.bf16.mxu0 0
        %491 = vmatpush1.bf16.msra.mxu0 0
        %492 = vmatprep.subr.bf16.mxu0 0
        %493 = vmatpush1.bf16.msra.mxu0 0
        %494 = vmatprep.subr.bf16.mxu0 0
        %495 = vmatpush1.bf16.msra.mxu0 0
        %496 = vmatprep.subr.bf16.mxu0 0
        %497 = vmatpush1.bf16.msra.mxu0 0
        %498 = vmatprep.subr.bf16.mxu0 0
        %499 = vmatpush1.bf16.msra.mxu0 0
        %500 = vmatprep.mubr.bf16.mxu0 0
        %501 = vmatmul.mubr.bf16.gmra.mrb[0].mxu0 %v464
        %v502 = vpop.f32.mrb[0].mxu0
        %v503 = vadd.f32 %v439, %v502
        %v504 = vpop.f32.mrb[0].mxu0
        %v505 = vpop.f32.mrb[0].mxu0
        %v506 = vadd.f32 %v444, %v505
        %v507 = vpop.f32.mrb[0].mxu0
        %508 = vmatprep.mubr.bf16.mxu0 0
        %509 = vmatmul.mubr.bf16.gmra.mrb[0].mxu0 %v465
        %v510 = vpop.f32.mrb[0].mxu0
        %v511 = vadd.f32 %v449, %v510
        %v512 = vpop.f32.mrb[0].mxu0
        %v513 = vpop.f32.mrb[0].mxu0
        %v514 = vadd.f32 %v454, %v513
        %v515 = vpop.f32.mrb[0].mxu0
        %516 = vdwg.mxu0
        %v517 = vmax.f32 %v503, 0.0
        %v518 = vmax.f32 %v506, 0.0
        %v519 = vmax.f32 %v511, 0.0
        %v520 = vmax.f32 %v514, 0.0
        %521 = vrot.lane.b32.xlu0 %v517, 1
        %v522 = vpop.permute.xlu0 %521
        %523 = vrot.lane.b32.xlu0 %v518, 1
        %v524 = vpop.permute.xlu0 %523
        %525 = vrot.lane.b32.xlu0 %v519, 1
        %v526 = vpop.permute.xlu0 %525
        %527 = vrot.lane.b32.xlu0 %v520, 1
        %v528 = vpop.permute.xlu0 %527
        %v530 = vlaneseq
        %v531 = vshrl.u32 %v530, 7
        %v532 = vsub.s32 0, %v531
        %v533 = vrot.slane %v410, %v532
        %v535 = vmul.f32 %v522, %v533
        %v536 = vmul.f32 %v524, %v533
        %v537 = vmul.f32 %v526, %v533
        %v538 = vmul.f32 %v528, %v533
        %539 = vrot.lane.b32.xlu0 %v517, 127
        %v540 = vpop.permute.xlu0 %539
        %541 = vrot.lane.b32.xlu0 %v518, 127
        %v542 = vpop.permute.xlu0 %541
        %543 = vrot.lane.b32.xlu0 %v519, 127
        %v544 = vpop.permute.xlu0 %543
        %545 = vrot.lane.b32.xlu0 %v520, 127
        %v546 = vpop.permute.xlu0 %545
        %v548 = vlaneseq
        %v549 = vshrl.u32 %v548, 7
        %v550 = vsub.s32 0, %v549
        %v551 = vrot.slane %v411, %v550
        %v553 = vmul.f32 %v540, %v551
        %v554 = vmul.f32 %v542, %v551
        %v555 = vmul.f32 %v544, %v551
        %v556 = vmul.f32 %v546, %v551
        %v557 = vpack.c.bf16 %v536, %v535
        %v558 = vpack.c.bf16 %v538, %v537
        %v559 = vpack.c.bf16 %v518, %v517
        %v560 = vpack.c.bf16 %v520, %v519
        %v561 = vpack.c.bf16 %v554, %v553
        %v562 = vpack.c.bf16 %v556, %v555
        %564 = vset.pattern.permute.xlu0 0
        %565 = vperm.xlu0 %564, %v390
        %v566 = vpop.permute.xlu0 %565
        %569 = vset.pattern.permute.xlu0 0
        %570 = vperm.xlu0 %569, %v391
        %v571 = vpop.permute.xlu0 %570
        %574 = vset.pattern.permute.xlu0 0
        %575 = vperm.xlu0 %574, %v392
        %v576 = vpop.permute.xlu0 %575
        %579 = vset.pattern.permute.xlu0 0
        %580 = vperm.xlu0 %579, %v393
        %v581 = vpop.permute.xlu0 %580
        %v587 = vunpack.c.l.b16 %v366
        %v588 = vunpack.c.l.b16 %v367
        %v589 = vunpack.c.l.b16 %v368
        %v590 = vunpack.c.l.b16 %v369
        %v591 = vpack.c.b16 %v588, %v587
        %v592 = vpack.c.b16 %v590, %v589
        %vm593 = vcmask 785408
        %v595 = vsel %vm593, %v591, 0
        %v598 = vsel %vm593, %v592, 0
        %600 = vmatprep.subr.bf16.mxu0 0
        %601 = vmatpush1.bf16.msra.mxu0 %v557
        %602 = vmatprep.subr.bf16.mxu0 0
        %603 = vmatpush1.bf16.msra.mxu0 %v558
        %604 = vmatprep.subr.bf16.mxu0 0
        %605 = vmatpush1.bf16.msra.mxu0 %v559
        %606 = vmatprep.subr.bf16.mxu0 0
        %607 = vmatpush1.bf16.msra.mxu0 %v560
        %608 = vmatprep.subr.bf16.mxu0 0
        %609 = vmatpush1.bf16.msra.mxu0 %v561
        %610 = vmatprep.subr.bf16.mxu0 0
        %611 = vmatpush1.bf16.msra.mxu0 %v562
        %612 = vmatprep.subr.bf16.mxu0 0
        %613 = vmatpush1.bf16.msra.mxu0 0
        %614 = vmatprep.subr.bf16.mxu0 0
        %615 = vmatpush1.bf16.msra.mxu0 0
        %616 = vmatprep.subr.bf16.mxu0 0
        %617 = vmatpush1.bf16.msra.mxu0 0
        %618 = vmatprep.subr.bf16.mxu0 0
        %619 = vmatpush1.bf16.msra.mxu0 0
        %620 = vmatprep.subr.bf16.mxu0 0
        %621 = vmatpush1.bf16.msra.mxu0 0
        %622 = vmatprep.subr.bf16.mxu0 0
        %623 = vmatpush1.bf16.msra.mxu0 0
        %624 = vmatprep.subr.bf16.mxu0 0
        %625 = vmatpush1.bf16.msra.mxu0 0
        %626 = vmatprep.subr.bf16.mxu0 0
        %627 = vmatpush1.bf16.msra.mxu0 0
        %628 = vmatprep.subr.bf16.mxu0 0
        %629 = vmatpush1.bf16.msra.mxu0 0
        %630 = vmatprep.subr.bf16.mxu0 0
        %631 = vmatpush1.bf16.msra.mxu0 0
        %632 = vmatprep.mubr.bf16.mxu0 0
        %633 = vmatmul.mubr.bf16.gmra.mrb[0].mxu0 %v595
        %v634 = vpop.f32.mrb[0].mxu0
        %v635 = vadd.f32 %v566, %v634
        %v636 = vpop.f32.mrb[0].mxu0
        %v637 = vpop.f32.mrb[0].mxu0
        %v638 = vadd.f32 %v571, %v637
        %v639 = vpop.f32.mrb[0].mxu0
        %640 = vmatprep.mubr.bf16.mxu0 0
        %641 = vmatmul.mubr.bf16.gmra.mrb[0].mxu0 %v598
        %v642 = vpop.f32.mrb[0].mxu0
        %v643 = vadd.f32 %v576, %v642
        %v644 = vpop.f32.mrb[0].mxu0
        %v645 = vpop.f32.mrb[0].mxu0
        %v646 = vadd.f32 %v581, %v645
        %v647 = vpop.f32.mrb[0].mxu0
        %648 = vdwg.mxu0
        %v649 = vmax.f32 %v635, 0.0
        %v650 = vmax.f32 %v638, 0.0
        %v651 = vmax.f32 %v643, 0.0
        %v652 = vmax.f32 %v646, 0.0
        %v653 = vpack.c.bf16 %v650, %v649
        %v654 = vpack.c.bf16 %v652, %v651
        %656 = vset.pattern.permute.xlu0 0
        %657 = vperm.xlu0 %656, %v394
        %v658 = vpop.permute.xlu0 %657
        %661 = vset.pattern.permute.xlu0 0
        %662 = vperm.xlu0 %661, %v395
        %v663 = vpop.permute.xlu0 %662
        %666 = vset.pattern.permute.xlu0 0
        %667 = vperm.xlu0 %666, %v396
        %v668 = vpop.permute.xlu0 %667
        %671 = vset.pattern.permute.xlu0 0
        %672 = vperm.xlu0 %671, %v397
        %v673 = vpop.permute.xlu0 %672
        %676 = vset.pattern.permute.xlu0 0
        %677 = vperm.xlu0 %676, %v398
        %v678 = vpop.permute.xlu0 %677
        %681 = vset.pattern.permute.xlu0 0
        %682 = vperm.xlu0 %681, %v399
        %v683 = vpop.permute.xlu0 %682
        %686 = vset.pattern.permute.xlu0 0
        %687 = vperm.xlu0 %686, %v400
        %v688 = vpop.permute.xlu0 %687
        %691 = vset.pattern.permute.xlu0 0
        %692 = vperm.xlu0 %691, %v401
        %v693 = vpop.permute.xlu0 %692
        %696 = vset.pattern.permute.xlu0 0
        %697 = vperm.xlu0 %696, %v402
        %v698 = vpop.permute.xlu0 %697
        %701 = vset.pattern.permute.xlu0 0
        %702 = vperm.xlu0 %701, %v403
        %v703 = vpop.permute.xlu0 %702
        %706 = vset.pattern.permute.xlu0 0
        %707 = vperm.xlu0 %706, %v404
        %v708 = vpop.permute.xlu0 %707
        %711 = vset.pattern.permute.xlu0 0
        %712 = vperm.xlu0 %711, %v405
        %v713 = vpop.permute.xlu0 %712
        %716 = vset.pattern.permute.xlu0 0
        %717 = vperm.xlu0 %716, %v406
        %v718 = vpop.permute.xlu0 %717
        %721 = vset.pattern.permute.xlu0 0
        %722 = vperm.xlu0 %721, %v407
        %v723 = vpop.permute.xlu0 %722
        %726 = vset.pattern.permute.xlu0 0
        %727 = vperm.xlu0 %726, %v408
        %v728 = vpop.permute.xlu0 %727
        %731 = vset.pattern.permute.xlu0 0
        %732 = vperm.xlu0 %731, %v409
        %v733 = vpop.permute.xlu0 %732
        %v751 = vunpack.c.l.b16 %v370
        %v752 = vunpack.c.l.b16 %v371
        %v753 = vunpack.c.l.b16 %v372
        %v754 = vunpack.c.l.b16 %v373
        %v755 = vunpack.c.l.b16 %v374
        %v756 = vunpack.c.l.b16 %v375
        %v757 = vunpack.c.l.b16 %v376
        %v758 = vunpack.c.l.b16 %v377
        %v759 = vunpack.c.l.b16 %v378
        %v760 = vunpack.c.l.b16 %v379
        %v761 = vunpack.c.l.b16 %v380
        %v762 = vunpack.c.l.b16 %v381
        %v763 = vunpack.c.l.b16 %v382
        %v764 = vunpack.c.l.b16 %v383
        %v765 = vunpack.c.l.b16 %v384
        %v766 = vunpack.c.l.b16 %v385
        %v767 = vpack.c.b16 %v752, %v751
        %v768 = vpack.c.b16 %v754, %v753
        %v769 = vpack.c.b16 %v756, %v755
        %v770 = vpack.c.b16 %v758, %v757
        %v771 = vpack.c.b16 %v760, %v759
        %v772 = vpack.c.b16 %v762, %v761
        %v773 = vpack.c.b16 %v764, %v763
        %v774 = vpack.c.b16 %v766, %v765
        %vm775 = vcmask 261120
        %v777 = vsel %vm775, %v767, 0
        %v780 = vsel %vm775, %v768, 0
        %v783 = vsel %vm775, %v769, 0
        %v786 = vsel %vm775, %v770, 0
        %v789 = vsel %vm775, %v771, 0
        %v792 = vsel %vm775, %v772, 0
        %v795 = vsel %vm775, %v773, 0
        %v798 = vsel %vm775, %v774, 0
        %800 = vmatprep.subr.bf16.mxu0 0
        %801 = vmatpush1.bf16.msra.mxu0 %v653
        %802 = vmatprep.subr.bf16.mxu0 0
        %803 = vmatpush1.bf16.msra.mxu0 %v654
        %804 = vmatprep.subr.bf16.mxu0 0
        %805 = vmatpush1.bf16.msra.mxu0 0
        %806 = vmatprep.subr.bf16.mxu0 0
        %807 = vmatpush1.bf16.msra.mxu0 0
        %808 = vmatprep.subr.bf16.mxu0 0
        %809 = vmatpush1.bf16.msra.mxu0 0
        %810 = vmatprep.subr.bf16.mxu0 0
        %811 = vmatpush1.bf16.msra.mxu0 0
        %812 = vmatprep.subr.bf16.mxu0 0
        %813 = vmatpush1.bf16.msra.mxu0 0
        %814 = vmatprep.subr.bf16.mxu0 0
        %815 = vmatpush1.bf16.msra.mxu0 0
        %816 = vmatprep.subr.bf16.mxu0 0
        %817 = vmatpush1.bf16.msra.mxu0 0
        %818 = vmatprep.subr.bf16.mxu0 0
        %819 = vmatpush1.bf16.msra.mxu0 0
        %820 = vmatprep.subr.bf16.mxu0 0
        %821 = vmatpush1.bf16.msra.mxu0 0
        %822 = vmatprep.subr.bf16.mxu0 0
        %823 = vmatpush1.bf16.msra.mxu0 0
        %824 = vmatprep.subr.bf16.mxu0 0
        %825 = vmatpush1.bf16.msra.mxu0 0
        %826 = vmatprep.subr.bf16.mxu0 0
        %827 = vmatpush1.bf16.msra.mxu0 0
        %828 = vmatprep.subr.bf16.mxu0 0
        %829 = vmatpush1.bf16.msra.mxu0 0
        %830 = vmatprep.subr.bf16.mxu0 0
        %831 = vmatpush1.bf16.msra.mxu0 0
        %832 = vmatprep.mubr.bf16.mxu0 0
        %833 = vmatmul.mubr.bf16.gmra.mrb[0].mxu0 %v777
        %v834 = vpop.f32.mrb[0].mxu0
        %v835 = vadd.f32 %v658, %v834
        %v836 = vpop.f32.mrb[0].mxu0
        %v837 = vpop.f32.mrb[0].mxu0
        %v838 = vadd.f32 %v663, %v837
        %v839 = vpop.f32.mrb[0].mxu0
        %840 = vmatprep.mubr.bf16.mxu0 0
        %841 = vmatmul.mubr.bf16.gmra.mrb[0].mxu0 %v780
        %v842 = vpop.f32.mrb[0].mxu0
        %v843 = vadd.f32 %v668, %v842
        %v844 = vpop.f32.mrb[0].mxu0
        %v845 = vpop.f32.mrb[0].mxu0
        %v846 = vadd.f32 %v673, %v845
        %v847 = vpop.f32.mrb[0].mxu0
        %848 = vmatprep.mubr.bf16.mxu0 0
        %849 = vmatmul.mubr.bf16.gmra.mrb[0].mxu0 %v783
        %v850 = vpop.f32.mrb[0].mxu0
        %v851 = vadd.f32 %v678, %v850
        %v852 = vpop.f32.mrb[0].mxu0
        %v853 = vpop.f32.mrb[0].mxu0
        %v854 = vadd.f32 %v683, %v853
        %v855 = vpop.f32.mrb[0].mxu0
        %856 = vmatprep.mubr.bf16.mxu0 0
        %857 = vmatmul.mubr.bf16.gmra.mrb[0].mxu0 %v786
        %v858 = vpop.f32.mrb[0].mxu0
        %v859 = vadd.f32 %v688, %v858
        %v860 = vpop.f32.mrb[0].mxu0
        %v861 = vpop.f32.mrb[0].mxu0
        %v862 = vadd.f32 %v693, %v861
        %v863 = vpop.f32.mrb[0].mxu0
        %864 = vmatprep.mubr.bf16.mxu0 0
        %865 = vmatmul.mubr.bf16.gmra.mrb[0].mxu0 %v789
        %v866 = vpop.f32.mrb[0].mxu0
        %v867 = vadd.f32 %v698, %v866
        %v868 = vpop.f32.mrb[0].mxu0
        %v869 = vpop.f32.mrb[0].mxu0
        %v870 = vadd.f32 %v703, %v869
        %v871 = vpop.f32.mrb[0].mxu0
        %872 = vmatprep.mubr.bf16.mxu0 0
        %873 = vmatmul.mubr.bf16.gmra.mrb[0].mxu0 %v792
        %v874 = vpop.f32.mrb[0].mxu0
        %v875 = vadd.f32 %v708, %v874
        %v876 = vpop.f32.mrb[0].mxu0
        %v877 = vpop.f32.mrb[0].mxu0
        %v878 = vadd.f32 %v713, %v877
        %v879 = vpop.f32.mrb[0].mxu0
        %880 = vmatprep.mubr.bf16.mxu0 0
        %881 = vmatmul.mubr.bf16.gmra.mrb[0].mxu0 %v795
        %v882 = vpop.f32.mrb[0].mxu0
        %v883 = vadd.f32 %v718, %v882
        %v884 = vpop.f32.mrb[0].mxu0
        %v885 = vpop.f32.mrb[0].mxu0
        %v886 = vadd.f32 %v723, %v885
        %v887 = vpop.f32.mrb[0].mxu0
        %888 = vmatprep.mubr.bf16.mxu0 0
        %889 = vmatmul.mubr.bf16.gmra.mrb[0].mxu0 %v798
        %v890 = vpop.f32.mrb[0].mxu0
        %v891 = vadd.f32 %v728, %v890
        %v892 = vpop.f32.mrb[0].mxu0
        %v893 = vpop.f32.mrb[0].mxu0
        %v894 = vadd.f32 %v733, %v893
        %v895 = vpop.f32.mrb[0].mxu0
        %896 = vdwg.mxu0
        %v897 = vadd.f32 %v835, %v412
        %v898 = vadd.f32 %v838, %v413
        %v899 = vadd.f32 %v843, %v414
        %v900 = vadd.f32 %v846, %v415
        %v901 = vadd.f32 %v851, %v416
        %v902 = vadd.f32 %v854, %v417
        %v903 = vadd.f32 %v859, %v418
        %v904 = vadd.f32 %v862, %v419
        %v905 = vadd.f32 %v867, %v420
        %v906 = vadd.f32 %v870, %v421
        %v907 = vadd.f32 %v875, %v422
        %v908 = vadd.f32 %v878, %v423
        %v909 = vadd.f32 %v883, %v424
        %v910 = vadd.f32 %v886, %v425
        %v911 = vadd.f32 %v891, %v426
        %v912 = vadd.f32 %v894, %v427
        %v913 = vmax.f32 %v897, 0.0
        %v914 = vmax.f32 %v898, 0.0
        %v915 = vmax.f32 %v899, 0.0
        %v916 = vmax.f32 %v900, 0.0
        %v917 = vmax.f32 %v901, 0.0
        %v918 = vmax.f32 %v902, 0.0
        %v919 = vmax.f32 %v903, 0.0
        %v920 = vmax.f32 %v904, 0.0
        %v921 = vmax.f32 %v905, 0.0
        %v922 = vmax.f32 %v906, 0.0
        %v923 = vmax.f32 %v907, 0.0
        %v924 = vmax.f32 %v908, 0.0
        %v925 = vmax.f32 %v909, 0.0
        %v926 = vmax.f32 %v910, 0.0
        %v927 = vmax.f32 %v911, 0.0
        %v928 = vmax.f32 %v912, 0.0
        %929 = vst [vmem:[%s355] sm:$0xff] %v913
        %930 = vst [vmem:[%s355 + $0x8] sm:$0xff] %v914
        %931 = vst [vmem:[%s355 + $0x10] sm:$0xff] %v915
        %932 = vst [vmem:[%s355 + $0x18] sm:$0xff] %v916
        %933 = vst [vmem:[%s355 + $0x20] sm:$0xff] %v917
        %934 = vst [vmem:[%s355 + $0x28] sm:$0xff] %v918
        %935 = vst [vmem:[%s355 + $0x30] sm:$0xff] %v919
        %936 = vst [vmem:[%s355 + $0x38] sm:$0xff] %v920
        %937 = vst [vmem:[%s355 + $0x40] sm:$0xff] %v921
        %938 = vst [vmem:[%s355 + $0x48] sm:$0xff] %v922
        %939 = vst [vmem:[%s355 + $0x50] sm:$0xff] %v923
        %940 = vst [vmem:[%s355 + $0x58] sm:$0xff] %v924
        %941 = vst [vmem:[%s355 + $0x60] sm:$0xff] %v925
        %942 = vst [vmem:[%s355 + $0x68] sm:$0xff] %v926
        %943 = vst [vmem:[%s355 + $0x70] sm:$0xff] %v927
        %944 = vst [vmem:[%s355 + $0x78] sm:$0xff] %v928
        %s945 = sand.u32 %s227, 1
        %s946 = scalar_lea.sflag [#allocation4], %s945
        %s947 = sand.u32 %s227, 1
        %s948 = smul.addr %s947, 128
        %s949 = scalar_lea.vmem [#allocation7], %s948
        // Predicated region
        $region65: #{tpu_custom_call.1} parent=55 // pred_check
          %p950 = pneg %p237
        $region66: #{tpu_custom_call.1} parent=55 // pred_check_branch
          %952 = sbr.rel (%p950) target = $region68
        $region67: #{tpu_custom_call.1} parent=55 // pred_region
          %s954 = ssub.s32 2048, 2048
          %955 = vsyncadd %s946, %s954
          %s956 = smul.addr %s25, 16
          %s957 = smul.addr %s956, 128
          %s958 = scalar_lea.hbm %s9, %s957
          %s959 = sshll.u32 %s949, 4
          %s960 = int_to_ptr.vmem [resolvable:$true] %s959
          %965 = dma.vmem_to_hbm [thread:$0]  %s960, 2048, %s958, %s946, 128, 128, 8
        $region68: #{tpu_custom_call.1} parent=55 // pred_fallthru
          _
      $region56: #{tpu_custom_call.1} parent=5 // pred_fallthru
        _
      %p966 = scmp.le.s32.totalorder 2, %s20
      // Predicated region
      $region69: #{tpu_custom_call.1} parent=5 // pred_check
        %p967 = pneg %p966
      $region70: #{tpu_custom_call.1} parent=5 // pred_check_branch
        %969 = sbr.rel (%p967) target = $region72
      $region71: #{tpu_custom_call.1} parent=5 // pred_region
        %s970 = ssub.s32 %s20, 2
        // Predicated region
        $region73: #{tpu_custom_call.1} parent=71 // pred_check
          %p971 = pneg %p243
        $region74: #{tpu_custom_call.1} parent=71 // pred_check_branch
          %973 = sbr.rel (%p971) target = $region76
        $region75: #{tpu_custom_call.1} parent=71 // pred_region
          %s974 = sand.u32 %s228, 1
          %s975 = scalar_lea.sflag [#allocation4], %s974
          %s976 = sand.u32 %s228, 1
          %s977 = smul.addr %s976, 128
          %s978 = scalar_lea.vmem [#allocation7], %s977
          %979 = dma.done %s975, 2048
        $region76: #{tpu_custom_call.1} parent=71 // pred_fallthru
          _
      $region72: #{tpu_custom_call.1} parent=5 // pred_fallthru
        _
    $region6: #{tpu_custom_call.1} parent=1 // loop_footer
      %s24 = sadd.s32 1, %s20
    $region7: #{tpu_custom_call.1} parent=1 // loop_footer_branch
      %19 = sbr.rel target = $region3
    $region8: #{tpu_custom_call.1} parent=1 // loop_exit
      _
    %980 = vsyncpa [#allocation3], 1
    %s981 = scalar_lea.sflag [#allocation3], 1
    %982 = vsyncpa %s981, 1
    %983 = vsyncpa [#allocation6], 1
    %984 = vsyncpa [#allocation4], 1
    %s985 = scalar_lea.sflag [#allocation4], 1
    %986 = vsyncpa %s985, 1

</llo_original>
